<compile_context>
chip_gen: v6e
topology: v6e:2x2x1
jax: 0.10.0
libtpu: 0.0.40
codegen_flags: <defaults>
</compile_context>

<pallas_src>
import functools

import numpy as np
import jax
import jax.numpy as jnp
from jax import lax
from jax.experimental import pallas as pl
from jax.experimental.pallas import tpu as pltpu


# Tile caps (not "round up to" targets): a dim that fits in one tile is used at full
# extent with no padding; only dims larger than the cap are tiled (divisor rule).
_MAX_TM = 256          # batch tile cap (sublane axis, align 8)
_MAX_TN = 512          # out-features tile cap (align 128 when tiled)
_MAX_TK = 1024         # in-features tile cap for the tiled-K fallback (align 128)
_MAX_FULL_K = 2048     # use full-K blocks (no reduction axis) when In <= this
_VMEM_LIMIT = 48 * 1024 * 1024   # below v7x's 64 MiB physical, above 16/32 MiB defaults

_DN = (((1,), (1,)), ((), ()))   # contract axis 1 of x with axis 1 of W  ==  x @ W.T


# ---------------------------------------------------------------------------
# Kernels
# ---------------------------------------------------------------------------

def _noisy_fullk_kernel(x_ref, wmu_ref, wsig_ref, eps_in_ref, eps_out_ref, b_ref,
                        o_ref):
    """y = x @ Wmu.T + ((x*eps_in) @ Wsig.T) * eps_out + b, single K block."""
    x = x_ref[...]                                   # (tm, K), stream dtype
    xe = x * eps_in_ref[...]                         # (1, K) row scale on the VPU
    mu = lax.dot_general(x, wmu_ref[...], _DN,
                         preferred_element_type=jnp.float32)       # (tm, tn) f32
    noise = lax.dot_general(xe, wsig_ref[...], _DN,
                            preferred_element_type=jnp.float32)    # (tm, tn) f32
    out = mu + noise * eps_out_ref[...] + b_ref[...]                # eps_out/b: f32 (1, tn)
    o_ref[...] = out.astype(o_ref.dtype)


def _plain_fullk_kernel(x_ref, wmu_ref, b_ref, o_ref):
    """Eval mode: y = x @ Wmu.T + b, single K block."""
    acc = lax.dot_general(x_ref[...], wmu_ref[...], _DN,
                          preferred_element_type=jnp.float32)
    o_ref[...] = (acc + b_ref[...]).astype(o_ref.dtype)


def _noisy_tiledk_kernel(x_ref, wmu_ref, wsig_ref, eps_in_ref, eps_out_ref, b_ref,
                         o_ref, acc_ref):
    """Tiled-K fallback (huge In): f32 accumulator, reduction axis last."""
    k = pl.program_id(2)

    @pl.when(k == 0)
    def _():
        acc_ref[...] = jnp.zeros_like(acc_ref)

    x = x_ref[...]
    xe = x * eps_in_ref[...]
    part = lax.dot_general(x, wmu_ref[...], _DN, preferred_element_type=jnp.float32)
    part += lax.dot_general(xe, wsig_ref[...], _DN,
                            preferred_element_type=jnp.float32) * eps_out_ref[...]
    acc_ref[...] += part

    @pl.when(k == pl.num_programs(2) - 1)
    def _():
        o_ref[...] = (acc_ref[...] + b_ref[...]).astype(o_ref.dtype)


def _plain_tiledk_kernel(x_ref, wmu_ref, b_ref, o_ref, acc_ref):
    """Eval-mode tiled-K fallback."""
    k = pl.program_id(2)

    @pl.when(k == 0)
    def _():
        acc_ref[...] = jnp.zeros_like(acc_ref)

    acc_ref[...] += lax.dot_general(x_ref[...], wmu_ref[...], _DN,
                                    preferred_element_type=jnp.float32)

    @pl.when(k == pl.num_programs(2) - 1)
    def _():
        o_ref[...] = (acc_ref[...] + b_ref[...]).astype(o_ref.dtype)


# ---------------------------------------------------------------------------
# Tiling helpers
# ---------------------------------------------------------------------------

def _pad_axis(a, axis, new_size):
    pad = new_size - a.shape[axis]
    if pad <= 0:
        return a
    widths = [(0, 0)] * a.ndim
    widths[axis] = (0, pad)
    return jnp.pad(a, widths)


def _choose_tile(dim, max_tile, align):
    """Minimal-padding tile choice.

    If `dim` fits in one tile, use the full extent (no padding, no alignment
    requirement thanks to the full-dim exemption).  Otherwise pad only to the
    layout minimum (`align`) and pick the largest multiple of `align` that divides
    the padded dim and is <= max_tile.
    """
    if dim <= max_tile:
        return dim, dim
    padded = -(-dim // align) * align
    tile = align
    for cand in range(align, max_tile + 1, align):
        if padded % cand == 0:
            tile = cand
    return tile, padded


# ---------------------------------------------------------------------------
# Wrapper
# ---------------------------------------------------------------------------

def noisy_linear_forward(x, weight_mu, weight_sigma, bias_mu, bias_sigma,
                         eps_in=None, eps_out=None, *, training=True,
                         max_tm=_MAX_TM, max_tn=_MAX_TN, max_tk=_MAX_TK,
                         max_full_k=_MAX_FULL_K):
    """Pallas forward for NoisyLinear.

    x: (B, In); weight_mu/weight_sigma: (Out, In); bias_mu/bias_sigma: (Out,);
    eps_in: (In,), eps_out: (Out,)  (factorised noise: weight_epsilon would be
    outer(eps_out, eps_in) and bias_epsilon == eps_out).  Returns (B, Out) in x.dtype.

    Weights / x / eps_in stream in weight_mu.dtype (pass bf16 params for half the HBM
    traffic); accumulation is always f32 on the MXU.
    """
    B, In = x.shape
    Out, In_w = weight_mu.shape
    assert In_w == In

    tm, Bp = _choose_tile(B, max_tm, 8)
    tn, Outp = _choose_tile(Out, max_tn, 128)
    full_k = In <= max_full_k
    if full_k:
        tk, Inp = In, In
    else:
        tk, Inp = _choose_tile(In, max_tk, 128)

    # Give v7x's second TensorCore work when the parallel grid collapses to one tile.
    if (Bp // tm) * (Outp // tn) < 2 and tn == Outp and Outp % 128 == 0 and Outp >= 256:
        half = Outp // 2
        tn = half if half % 128 == 0 else 128

    stream_dtype = weight_mu.dtype
    out_dtype = x.dtype

    # Padding below is a no-op for layout-friendly shapes (the common case); only
    # dims that are both tiled and misaligned get padded to the 8/128 minimum.
    xp = _pad_axis(_pad_axis(x.astype(stream_dtype), 0, Bp), 1, Inp)
    wmu = _pad_axis(_pad_axis(weight_mu, 0, Outp), 1, Inp)

    # Effective bias as a lane-dense f32 (1, Out) row (tiny; bias_epsilon == eps_out).
    if training:
        b_eff = (bias_mu.astype(jnp.float32)
                 + bias_sigma.astype(jnp.float32) * eps_out.astype(jnp.float32))
    else:
        b_eff = bias_mu.astype(jnp.float32)
    b_row = _pad_axis(b_eff.reshape(1, Out), 1, Outp)

    out_shape = jax.ShapeDtypeStruct((Bp, Outp), out_dtype)

    if full_k:
        # 2-D grid, weight-tile axis OUTERMOST / batch-tile axis innermost: the weight
        # index_map depends only on j, so each (tn, In) weight tile is DMA'd once.
        grid = (Outp // tn, Bp // tm)
        x_spec = pl.BlockSpec((tm, tk), lambda j, i: (i, 0))
        w_spec = pl.BlockSpec((tn, tk), lambda j, i: (j, 0))
        ein_spec = pl.BlockSpec((1, tk), lambda j, i: (0, 0))
        row_spec = pl.BlockSpec((1, tn), lambda j, i: (0, j))
        o_spec = pl.BlockSpec((tm, tn), lambda j, i: (i, j))
        scratch = []
        semantics = ("parallel", "parallel")
    else:
        grid = (Outp // tn, Bp // tm, Inp // tk)          # reduction axis last
        x_spec = pl.BlockSpec((tm, tk), lambda j, i, k: (i, k))
        w_spec = pl.BlockSpec((tn, tk), lambda j, i, k: (j, k))
        ein_spec = pl.BlockSpec((1, tk), lambda j, i, k: (0, k))
        row_spec = pl.BlockSpec((1, tn), lambda j, i, k: (0, j))
        o_spec = pl.BlockSpec((tm, tn), lambda j, i, k: (i, j))
        scratch = [pltpu.VMEM((tm, tn), jnp.float32)]
        semantics = ("parallel", "parallel", "arbitrary")

    cparams = pltpu.CompilerParams(dimension_semantics=semantics,
                                   vmem_limit_bytes=_VMEM_LIMIT)

    if training:
        wsig = _pad_axis(_pad_axis(weight_sigma, 0, Outp), 1, Inp)
        e_in = _pad_axis(eps_in.reshape(1, In).astype(stream_dtype), 1, Inp)
        e_out = _pad_axis(eps_out.reshape(1, Out).astype(jnp.float32), 1, Outp)
        kernel = _noisy_fullk_kernel if full_k else _noisy_tiledk_kernel
        out = pl.pallas_call(
            kernel,
            out_shape=out_shape,
            grid_spec=pltpu.PrefetchScalarGridSpec(
                num_scalar_prefetch=0,
                grid=grid,
                in_specs=[x_spec, w_spec, w_spec, ein_spec, row_spec, row_spec],
                out_specs=o_spec,
                scratch_shapes=scratch),
            compiler_params=cparams,
        )(xp, wmu, wsig, e_in, e_out, b_row)
    else:
        # Eval: do not stream sigma / epsilon at all.
        kernel = _plain_fullk_kernel if full_k else _plain_tiledk_kernel
        out = pl.pallas_call(
            kernel,
            out_shape=out_shape,
            grid_spec=pltpu.PrefetchScalarGridSpec(
                num_scalar_prefetch=0,
                grid=grid,
                in_specs=[x_spec, w_spec, row_spec],
                out_specs=o_spec,
                scratch_shapes=scratch),
            compiler_params=cparams,
        )(xp, wmu, b_row)

    return out[:B, :Out]


# ---------------------------------------------------------------------------
# Parameter / noise init mirroring reset_parameters() / reset_noise()
# ---------------------------------------------------------------------------

def _scale_noise(key, size):
    # Matches NoisyLinear._scale_noise: sign(x) * sqrt(|x|), x ~ N(0, 1).
    x = jax.random.normal(key, (size,), dtype=jnp.float32)
    return jnp.sign(x) * jnp.sqrt(jnp.abs(x))


def make_noisy_linear_params(key, in_features, out_features, std_init=0.5):
    # TODO(synk): torch's stateful buffer update (reset_noise copying into
    # weight_epsilon/bias_epsilon) has no kernel equivalent; noise vectors are
    # sampled here with jax.random and passed to the forward explicitly.
    k_wmu, k_bmu, k_ein, k_eout = jax.random.split(key, 4)
    mu_range = 1.0 / np.sqrt(in_features)

    weight_mu = jax.random.uniform(
        k_wmu, (out_features, in_features), jnp.float32, -mu_range, mu_range)
    weight_sigma = jnp.full((out_features, in_features),
                            std_init / np.sqrt(in_features), jnp.float32)
    bias_mu = jax.random.uniform(
        k_bmu, (out_features,), jnp.float32, -mu_range, mu_range)
    bias_sigma = jnp.full((out_features,),
                          std_init / np.sqrt(out_features), jnp.float32)

    eps_in = _scale_noise(k_ein, in_features)
    eps_out = _scale_noise(k_eout, out_features)
    return dict(weight_mu=weight_mu, weight_sigma=weight_sigma,
                bias_mu=bias_mu, bias_sigma=bias_sigma,
                eps_in=eps_in, eps_out=eps_out)


def _reference(x, p, training):
    xf = x.astype(jnp.float32)
    wmu = p["weight_mu"].astype(jnp.float32)
    bmu = p["bias_mu"].astype(jnp.float32)
    if not training:
        return xf @ wmu.T + bmu
    wsig = p["weight_sigma"].astype(jnp.float32)
    e_in = p["eps_in"].astype(jnp.float32)
    e_out = p["eps_out"].astype(jnp.float32)
    w_eff = wmu + wsig * jnp.outer(e_out, e_in)
    b_eff = bmu + p["bias_sigma"].astype(jnp.float32) * e_out
    return xf @ w_eff.T + b_eff


if __name__ == "__main__":
    key = jax.random.PRNGKey(0)
    k_p1, k_x1, k_p2, k_x2 = jax.random.split(key, 4)

    fwd_train = jax.jit(functools.partial(noisy_linear_forward, training=True))
    fwd_eval = jax.jit(functools.partial(noisy_linear_forward, training=False))

    # --- Small shape: single grid tile, full-extent blocks, zero padding. ---
    B, In, Out = 8, 32, 64
    p = make_noisy_linear_params(k_p1, In, Out, std_init=0.5)
    x = jax.random.normal(k_x1, (B, In), dtype=jnp.float32)

    y = jax.block_until_ready(fwd_train(
        x, p["weight_mu"], p["weight_sigma"], p["bias_mu"], p["bias_sigma"],
        p["eps_in"], p["eps_out"]))
    np.testing.assert_allclose(np.asarray(y), np.asarray(_reference(x, p, True)),
                               rtol=1e-5, atol=1e-5)

    y_eval = jax.block_until_ready(fwd_eval(
        x, p["weight_mu"], p["weight_sigma"], p["bias_mu"], p["bias_sigma"],
        p["eps_in"], p["eps_out"]))
    np.testing.assert_allclose(np.asarray(y_eval),
                               np.asarray(_reference(x, p, False)),
                               rtol=1e-5, atol=1e-5)

    # --- bf16 streaming path (weights/x/eps_in bf16, f32 accumulation). ---
    pb = dict(p)
    for name in ("weight_mu", "weight_sigma", "eps_in"):
        pb[name] = p[name].astype(jnp.bfloat16)
    xb = x.astype(jnp.bfloat16)
    yb = jax.block_until_ready(fwd_train(
        xb, pb["weight_mu"], pb["weight_sigma"], pb["bias_mu"], pb["bias_sigma"],
        pb["eps_in"], pb["eps_out"]))
    np.testing.assert_allclose(np.asarray(yb).astype(np.float32),
                               np.asarray(_reference(xb, pb, True)),
                               rtol=2e-2, atol=2e-2)

    # --- Layout-friendly larger shape: full-K, Out split into 128-wide tiles
    #     (>=2 parallel tiles for v7x megacore), NO padding (prev version padded
    #     384x640 -> 512x1024). ---
    B2, In2, Out2 = 20, 640, 384
    p2 = make_noisy_linear_params(k_p2, In2, Out2, std_init=0.5)
    x2 = jax.random.normal(k_x2, (B2, In2), dtype=jnp.float32)

    y2 = jax.block_until_ready(fwd_train(
        x2, p2["weight_mu"], p2["weight_sigma"], p2["bias_mu"], p2["bias_sigma"],
        p2["eps_in"], p2["eps_out"]))
    np.testing.assert_allclose(np.asarray(y2), np.asarray(_reference(x2, p2, True)),
                               rtol=1e-4, atol=1e-4)

    y2_eval = jax.block_until_ready(fwd_eval(
        x2, p2["weight_mu"], p2["weight_sigma"], p2["bias_mu"], p2["bias_sigma"],
        p2["eps_in"], p2["eps_out"]))
    np.testing.assert_allclose(np.asarray(y2_eval),
                               np.asarray(_reference(x2, p2, False)),
                               rtol=1e-4, atol=1e-4)

    # --- Tiled-K fallback (forced small K tiles to exercise the accumulator path). ---
    fwd_train_tk = jax.jit(functools.partial(
        noisy_linear_forward, training=True, max_full_k=0, max_tk=256))
    fwd_eval_tk = jax.jit(functools.partial(
        noisy_linear_forward, training=False, max_full_k=0, max_tk=256))

    y3 = jax.block_until_ready(fwd_train_tk(
        x2, p2["weight_mu"], p2["weight_sigma"], p2["bias_mu"], p2["bias_sigma"],
        p2["eps_in"], p2["eps_out"]))
    np.testing.assert_allclose(np.asarray(y3), np.asarray(_reference(x2, p2, True)),
                               rtol=1e-4, atol=1e-4)

    y3_eval = jax.block_until_ready(fwd_eval_tk(
        x2, p2["weight_mu"], p2["weight_sigma"], p2["bias_mu"], p2["bias_sigma"],
        p2["eps_in"], p2["eps_out"]))
    np.testing.assert_allclose(np.asarray(y3_eval),
                               np.asarray(_reference(x2, p2, False)),
                               rtol=1e-4, atol=1e-4)

    print("KERNEL_OK")
</pallas_src>

<mosaic_0001>
module attributes {stable_mosaic.version = 11 : i64} {
  func.func @_noisy_fullk_kernel(%arg0: i32, %arg1: i32, %arg2: memref<8x32xf32, #tpu.memory_space<vmem>>, %arg3: memref<64x32xf32, #tpu.memory_space<vmem>>, %arg4: memref<64x32xf32, #tpu.memory_space<vmem>>, %arg5: memref<1x32xf32, #tpu.memory_space<vmem>>, %arg6: memref<1x64xf32, #tpu.memory_space<vmem>>, %arg7: memref<1x64xf32, #tpu.memory_space<vmem>>, %arg8: memref<8x64xf32, #tpu.memory_space<vmem>>) attributes {dimension_semantics = [#tpu.dimension_semantics<parallel>, #tpu.dimension_semantics<parallel>], iteration_bounds = array<i64: 1, 1>, scalar_prefetch = 0 : i64, scratch_operands = 0 : i64, tpu.core_type = #tpu.core_type<tc>, window_params = [{transform_indices = @transform_0, window_bounds = array<i64: 8, 32>}, {transform_indices = @transform_1, window_bounds = array<i64: 64, 32>}, {transform_indices = @transform_2, window_bounds = array<i64: 64, 32>}, {pipeline_mode = #tpu.pipeline_mode<synchronous>, transform_indices = @transform_3, window_bounds = array<i64: 1, 32>}, {transform_indices = @transform_4, window_bounds = array<i64: 1, 64>}, {transform_indices = @transform_5, window_bounds = array<i64: 1, 64>}, {transform_indices = @transform_6, window_bounds = array<i64: 8, 64>}]} {
    %c0 = arith.constant 0 : index
    %c0_0 = arith.constant 0 : index
    %0 = vector.load %arg2[%c0, %c0_0] : memref<8x32xf32, #tpu.memory_space<vmem>>, vector<8x32xf32>
    %c0_1 = arith.constant 0 : index
    %c0_2 = arith.constant 0 : index
    %1 = vector.load %arg5[%c0_1, %c0_2] : memref<1x32xf32, #tpu.memory_space<vmem>>, vector<1x32xf32>
    %2 = vector.broadcast %1 : vector<1x32xf32> to vector<8x32xf32>
    %3 = arith.mulf %0, %2 : vector<8x32xf32>
    %c0_3 = arith.constant 0 : index
    %c0_4 = arith.constant 0 : index
    %4 = vector.load %arg3[%c0_3, %c0_4] : memref<64x32xf32, #tpu.memory_space<vmem>>, vector<64x32xf32>
    %cst = arith.constant dense<0.000000e+00> : vector<8x64xf32>
    %5 = tpu.matmul %0, %4, %cst {dimension_numbers = #tpu.dot_dimension_numbers<[1], [1], [0], [0], [0, 0, 1, 0], [], []>} : vector<8x32xf32>, vector<64x32xf32>, vector<8x64xf32> -> vector<8x64xf32>
    %c0_5 = arith.constant 0 : index
    %c0_6 = arith.constant 0 : index
    %6 = vector.load %arg4[%c0_5, %c0_6] : memref<64x32xf32, #tpu.memory_space<vmem>>, vector<64x32xf32>
    %cst_7 = arith.constant dense<0.000000e+00> : vector<8x64xf32>
    %7 = tpu.matmul %3, %6, %cst_7 {dimension_numbers = #tpu.dot_dimension_numbers<[1], [1], [0], [0], [0, 0, 1, 0], [], []>} : vector<8x32xf32>, vector<64x32xf32>, vector<8x64xf32> -> vector<8x64xf32>
    %c0_8 = arith.constant 0 : index
    %c0_9 = arith.constant 0 : index
    %8 = vector.load %arg6[%c0_8, %c0_9] : memref<1x64xf32, #tpu.memory_space<vmem>>, vector<1x64xf32>
    %9 = vector.broadcast %8 : vector<1x64xf32> to vector<8x64xf32>
    %10 = arith.mulf %7, %9 : vector<8x64xf32>
    %11 = arith.addf %5, %10 : vector<8x64xf32>
    %c0_10 = arith.constant 0 : index
    %c0_11 = arith.constant 0 : index
    %12 = vector.load %arg7[%c0_10, %c0_11] : memref<1x64xf32, #tpu.memory_space<vmem>>, vector<1x64xf32>
    %13 = vector.broadcast %12 : vector<1x64xf32> to vector<8x64xf32>
    %14 = arith.addf %11, %13 : vector<8x64xf32>
    %c0_12 = arith.constant 0 : index
    %c0_13 = arith.constant 0 : index
    %15 = vector.load %arg8[%c0_12, %c0_13] : memref<8x64xf32, #tpu.memory_space<vmem>>, vector<8x64xf32>
    tpu.vector_store %arg8[%c0_12, %c0_13], %14 {strides = array<i32>} : memref<8x64xf32, #tpu.memory_space<vmem>>, vector<8x64xf32>,
    return
  }
  func.func @transform_0(%arg0: i32, %arg1: i32) -> (i32, i32) {
    %c0_i32 = arith.constant 0 : i32
    %c0_i32_0 = arith.constant 0 : i32
    return %arg1, %c0_i32 : i32, i32
  }
  func.func @transform_1(%arg0: i32, %arg1: i32) -> (i32, i32) {
    %c0_i32 = arith.constant 0 : i32
    %c0_i32_0 = arith.constant 0 : i32
    return %arg0, %c0_i32 : i32, i32
  }
  func.func @transform_2(%arg0: i32, %arg1: i32) -> (i32, i32) {
    %c0_i32 = arith.constant 0 : i32
    %c0_i32_0 = arith.constant 0 : i32
    return %arg0, %c0_i32 : i32, i32
  }
  func.func @transform_3(%arg0: i32, %arg1: i32) -> (i32, i32) {
    %c0_i32 = arith.constant 0 : i32
    %c0_i32_0 = arith.constant 0 : i32
    %c0_i32_1 = arith.constant 0 : i32
    return %c0_i32, %c0_i32_0 : i32, i32
  }
  func.func @transform_4(%arg0: i32, %arg1: i32) -> (i32, i32) {
    %c0_i32 = arith.constant 0 : i32
    %c0_i32_0 = arith.constant 0 : i32
    return %c0_i32, %arg0 : i32, i32
  }
  func.func @transform_5(%arg0: i32, %arg1: i32) -> (i32, i32) {
    %c0_i32 = arith.constant 0 : i32
    %c0_i32_0 = arith.constant 0 : i32
    return %c0_i32, %arg0 : i32, i32
  }
  func.func @transform_6(%arg0: i32, %arg1: i32) -> (i32, i32) {
    %c0_i32 = arith.constant 0 : i32
    return %arg1, %arg0 : i32, i32
  }
}

</mosaic_0001>

<llo_original>
// kernel: noisy_linear_forward.1
$region0: #{noisy_linear_forward.1}
  #allocation0 [shape = 'u32[]', space=smem, size = 0x4, offset = 0x4, fixed_abs, tag = 'smem constant byte address 0x4 - core index']
  #allocation1 [shape = 'u32[144,128]{1,0:T(1,128)}', space=vmem, size = 0x12000, scoped, tag = 'internal scratch']
  %s0 = inlined_call_operand.vmem [shape: f32[8,32], index: 0, kind: input, shape index: {}]
  %s1 = inlined_call_operand.vmem [shape: f32[64,32], index: 1, kind: input, shape index: {}]
  %s2 = inlined_call_operand.vmem [shape: f32[64,32], index: 2, kind: input, shape index: {}]
  %s3 = inlined_call_operand.vmem [shape: f32[1,32], index: 3, kind: input, shape index: {}]
  %s4 = inlined_call_operand.vmem [shape: f32[1,64], index: 4, kind: input, shape index: {}]
  %s5 = inlined_call_operand.vmem [shape: f32[1,64], index: 5, kind: input, shape index: {}]
  %s6 = inlined_call_operand.hbm [shape: f32[8,64], index: 6, kind: output, shape index: {}]
  %s7 = sld [smem:[#allocation0]]
  $region34: #{noisy_linear_forward.1} parent=0
    _
  %s9 = ssub.s32 1, %s7
  %s10 = scalar_select 0, %s9, %s7
  $region1: #{noisy_linear_forward.1} parent=0
    #allocation2 [shape = 'u8[4096]{0}', space=vmem, size = 0x1000, scoped, tag = 'output window, operand 0, single buffered']
    #allocation3 [shape = 's32[1]{0}', space=sflag, size = 0x4, scoped, tag = 'scoped memory for noisy_linear_forward.1']
    %11 = vsyncpa [#allocation3], 0
    // Predicated region
    $region2: #{noisy_linear_forward.1} parent=1 // pred_check
      _
    $region3: #{noisy_linear_forward.1} parent=1 // pred_check_branch
      %13 = sbr.rel (0) target = $region5
    $region4: #{noisy_linear_forward.1} parent=1 // pred_region
      _
    $region5: #{noisy_linear_forward.1} parent=1 // pred_fallthru
      _
    // Predicated region
    $region6: #{noisy_linear_forward.1} parent=1 // pred_check
      _
    $region7: #{noisy_linear_forward.1} parent=1 // pred_check_branch
      %15 = sbr.rel (0) target = $region9
    $region8: #{noisy_linear_forward.1} parent=1 // pred_region
      _
    $region9: #{noisy_linear_forward.1} parent=1 // pred_fallthru
      _
    // Predicated region
    $region10: #{noisy_linear_forward.1} parent=1 // pred_check
      _
    $region11: #{noisy_linear_forward.1} parent=1 // pred_check_branch
      %17 = sbr.rel (0) target = $region13
    $region12: #{noisy_linear_forward.1} parent=1 // pred_region
      _
    $region13: #{noisy_linear_forward.1} parent=1 // pred_fallthru
      _
    // Predicated region
    $region14: #{noisy_linear_forward.1} parent=1 // pred_check
      _
    $region15: #{noisy_linear_forward.1} parent=1 // pred_check_branch
      %19 = sbr.rel (0) target = $region17
    $region16: #{noisy_linear_forward.1} parent=1 // pred_region
      _
    $region17: #{noisy_linear_forward.1} parent=1 // pred_fallthru
      _
    // Predicated region
    $region18: #{noisy_linear_forward.1} parent=1 // pred_check
      _
    $region19: #{noisy_linear_forward.1} parent=1 // pred_check_branch
      %21 = sbr.rel (0) target = $region21
    $region20: #{noisy_linear_forward.1} parent=1 // pred_region
      _
    $region21: #{noisy_linear_forward.1} parent=1 // pred_fallthru
      _
    // Predicated region
    $region22: #{noisy_linear_forward.1} parent=1 // pred_check
      _
    $region23: #{noisy_linear_forward.1} parent=1 // pred_check_branch
      %23 = sbr.rel (0) target = $region25
    $region24: #{noisy_linear_forward.1} parent=1 // pred_region
      _
    $region25: #{noisy_linear_forward.1} parent=1 // pred_fallthru
      _
    %v24 = vld [vmem:[%s0] sm:$0xff]
    %v25 = vld [vmem:[%s3] sm:$0x1]
    %v27 = vlaneseq
    %v28 = vshrl.u32 %v27, 7
    %v29 = vsub.s32 0, %v28
    %v30 = vrot.slane %v25, %v29
    %v32 = vmul.f32 %v24, %v30
    %v33 = vld [vmem:[%s1] sm:$0xff]
    %v34 = vld [vmem:[%s1 + $0x8] sm:$0xff]
    %v35 = vld [vmem:[%s1 + $0x10] sm:$0xff]
    %v36 = vld [vmem:[%s1 + $0x18] sm:$0xff]
    %v37 = vld [vmem:[%s1 + $0x20] sm:$0xff]
    %v38 = vld [vmem:[%s1 + $0x28] sm:$0xff]
    %v39 = vld [vmem:[%s1 + $0x30] sm:$0xff]
    %v40 = vld [vmem:[%s1 + $0x38] sm:$0xff]
    %v41 = vld [vmem:[%s2] sm:$0xff]
    %v42 = vld [vmem:[%s2 + $0x8] sm:$0xff]
    %v43 = vld [vmem:[%s2 + $0x10] sm:$0xff]
    %v44 = vld [vmem:[%s2 + $0x18] sm:$0xff]
    %v45 = vld [vmem:[%s2 + $0x20] sm:$0xff]
    %v46 = vld [vmem:[%s2 + $0x28] sm:$0xff]
    %v47 = vld [vmem:[%s2 + $0x30] sm:$0xff]
    %v48 = vld [vmem:[%s2 + $0x38] sm:$0xff]
    %vm49 = vcmask 261120
    %v51 = vsel %vm49, %v32, 0
    %v54 = vsel %vm49, %v41, 0
    %v57 = vsel %vm49, %v42, 0
    %v60 = vsel %vm49, %v43, 0
    %v63 = vsel %vm49, %v44, 0
    %v66 = vsel %vm49, %v45, 0
    %v69 = vsel %vm49, %v46, 0
    %v72 = vsel %vm49, %v47, 0
    %v75 = vsel %vm49, %v48, 0
    %77 = vmatprep.subr.mxu0 0.0
    %78 = vmatpush1.xpose.msra.mxu0 0.0
    %79 = vmatprep.subr.mxu0 0.0
    %80 = vmatpush1.xpose.msra.mxu0 0.0
    %81 = vmatprep.subr.mxu0 0.0
    %82 = vmatpush1.xpose.msra.mxu0 0.0
    %83 = vmatprep.subr.mxu0 0.0
    %84 = vmatpush1.xpose.msra.mxu0 0.0
    %85 = vmatprep.subr.mxu0 0.0
    %86 = vmatpush1.xpose.msra.mxu0 0.0
    %87 = vmatprep.subr.mxu0 0.0
    %88 = vmatpush1.xpose.msra.mxu0 0.0
    %89 = vmatprep.subr.mxu0 0.0
    %90 = vmatpush1.xpose.msra.mxu0 0.0
    %91 = vmatprep.subr.mxu0 0.0
    %92 = vmatpush1.xpose.msra.mxu0 0.0
    %93 = vmatprep.subr.mxu0 0.0
    %94 = vmatpush1.xpose.msra.mxu0 %v75
    %95 = vmatprep.subr.mxu0 0.0
    %96 = vmatpush1.xpose.msra.mxu0 %v72
    %97 = vmatprep.subr.mxu0 0.0
    %98 = vmatpush1.xpose.msra.mxu0 %v69
    %99 = vmatprep.subr.mxu0 0.0
    %100 = vmatpush1.xpose.msra.mxu0 %v66
    %101 = vmatprep.subr.mxu0 0.0
    %102 = vmatpush1.xpose.msra.mxu0 %v63
    %103 = vmatprep.subr.mxu0 0.0
    %104 = vmatpush1.xpose.msra.mxu0 %v60
    %105 = vmatprep.subr.mxu0 0.0
    %106 = vmatpush1.xpose.msra.mxu0 %v57
    %107 = vmatprep.subr.mxu0 0.0
    %108 = vmatpush1.xpose.msra.mxu0 %v54
    %109 = vmatprep.subr.mxu0 0.0
    %110 = vmatpush2.xpose.msra.mxu0 0.0
    %111 = vmatprep.subr.mxu0 0.0
    %112 = vmatpush2.xpose.msra.mxu0 0.0
    %113 = vmatprep.subr.mxu0 0.0
    %114 = vmatpush2.xpose.msra.mxu0 0.0
    %115 = vmatprep.subr.mxu0 0.0
    %116 = vmatpush2.xpose.msra.mxu0 0.0
    %117 = vmatprep.subr.mxu0 0.0
    %118 = vmatpush2.xpose.msra.mxu0 0.0
    %119 = vmatprep.subr.mxu0 0.0
    %120 = vmatpush2.xpose.msra.mxu0 0.0
    %121 = vmatprep.subr.mxu0 0.0
    %122 = vmatpush2.xpose.msra.mxu0 0.0
    %123 = vmatprep.subr.mxu0 0.0
    %124 = vmatpush2.xpose.msra.mxu0 0.0
    %125 = vmatprep.subr.mxu0 0.0
    %126 = vmatpush2.xpose.msra.mxu0 0.0
    %127 = vmatprep.subr.mxu0 0.0
    %128 = vmatpush2.xpose.msra.mxu0 0.0
    %129 = vmatprep.subr.mxu0 0.0
    %130 = vmatpush2.xpose.msra.mxu0 0.0
    %131 = vmatprep.subr.mxu0 0.0
    %132 = vmatpush2.xpose.msra.mxu0 0.0
    %133 = vmatprep.subr.mxu0 0.0
    %134 = vmatpush2.xpose.msra.mxu0 0.0
    %135 = vmatprep.subr.mxu0 0.0
    %136 = vmatpush2.xpose.msra.mxu0 0.0
    %137 = vmatprep.subr.mxu0 0.0
    %138 = vmatpush2.xpose.msra.mxu0 0.0
    %139 = vmatprep.subr.mxu0 0.0
    %140 = vmatpush2.xpose.msra.mxu0 0.0
    %141 = vmatprep.mubr.f32.mxu0 0.0
    %142 = vmatmul.mubr.f32.gmra.mxu0 %v51
    %v143 = vpop.f32.mrf.mxu0
    %v144 = vadd.f32 0.0, %v143
    %v145 = vpop.f32.mrf.mxu0
    %146 = vdwg.mxu0
    %v147 = vld [vmem:[%s4] sm:$0x1]
    %v149 = vlaneseq
    %v150 = vshrl.u32 %v149, 7
    %v151 = vsub.s32 0, %v150
    %v152 = vrot.slane %v147, %v151
    %v154 = vmul.f32 %v144, %v152
    %v156 = vsel %vm49, %v24, 0
    %v159 = vsel %vm49, %v33, 0
    %v162 = vsel %vm49, %v34, 0
    %v165 = vsel %vm49, %v35, 0
    %v168 = vsel %vm49, %v36, 0
    %v171 = vsel %vm49, %v37, 0
    %v174 = vsel %vm49, %v38, 0
    %v177 = vsel %vm49, %v39, 0
    %v180 = vsel %vm49, %v40, 0
    %182 = vmatprep.subr.mxu0 0.0
    %183 = vmatpush1.xpose.msra.mxu0 0.0
    %184 = vmatprep.subr.mxu0 0.0
    %185 = vmatpush1.xpose.msra.mxu0 0.0
    %186 = vmatprep.subr.mxu0 0.0
    %187 = vmatpush1.xpose.msra.mxu0 0.0
    %188 = vmatprep.subr.mxu0 0.0
    %189 = vmatpush1.xpose.msra.mxu0 0.0
    %190 = vmatprep.subr.mxu0 0.0
    %191 = vmatpush1.xpose.msra.mxu0 0.0
    %192 = vmatprep.subr.mxu0 0.0
    %193 = vmatpush1.xpose.msra.mxu0 0.0
    %194 = vmatprep.subr.mxu0 0.0
    %195 = vmatpush1.xpose.msra.mxu0 0.0
    %196 = vmatprep.subr.mxu0 0.0
    %197 = vmatpush1.xpose.msra.mxu0 0.0
    %198 = vmatprep.subr.mxu0 0.0
    %199 = vmatpush1.xpose.msra.mxu0 %v180
    %200 = vmatprep.subr.mxu0 0.0
    %201 = vmatpush1.xpose.msra.mxu0 %v177
    %202 = vmatprep.subr.mxu0 0.0
    %203 = vmatpush1.xpose.msra.mxu0 %v174
    %204 = vmatprep.subr.mxu0 0.0
    %205 = vmatpush1.xpose.msra.mxu0 %v171
    %206 = vmatprep.subr.mxu0 0.0
    %207 = vmatpush1.xpose.msra.mxu0 %v168
    %208 = vmatprep.subr.mxu0 0.0
    %209 = vmatpush1.xpose.msra.mxu0 %v165
    %210 = vmatprep.subr.mxu0 0.0
    %211 = vmatpush1.xpose.msra.mxu0 %v162
    %212 = vmatprep.subr.mxu0 0.0
    %213 = vmatpush1.xpose.msra.mxu0 %v159
    %214 = vmatprep.subr.mxu0 0.0
    %215 = vmatpush2.xpose.msra.mxu0 0.0
    %216 = vmatprep.subr.mxu0 0.0
    %217 = vmatpush2.xpose.msra.mxu0 0.0
    %218 = vmatprep.subr.mxu0 0.0
    %219 = vmatpush2.xpose.msra.mxu0 0.0
    %220 = vmatprep.subr.mxu0 0.0
    %221 = vmatpush2.xpose.msra.mxu0 0.0
    %222 = vmatprep.subr.mxu0 0.0
    %223 = vmatpush2.xpose.msra.mxu0 0.0
    %224 = vmatprep.subr.mxu0 0.0
    %225 = vmatpush2.xpose.msra.mxu0 0.0
    %226 = vmatprep.subr.mxu0 0.0
    %227 = vmatpush2.xpose.msra.mxu0 0.0
    %228 = vmatprep.subr.mxu0 0.0
    %229 = vmatpush2.xpose.msra.mxu0 0.0
    %230 = vmatprep.subr.mxu0 0.0
    %231 = vmatpush2.xpose.msra.mxu0 0.0
    %232 = vmatprep.subr.mxu0 0.0
    %233 = vmatpush2.xpose.msra.mxu0 0.0
    %234 = vmatprep.subr.mxu0 0.0
    %235 = vmatpush2.xpose.msra.mxu0 0.0
    %236 = vmatprep.subr.mxu0 0.0
    %237 = vmatpush2.xpose.msra.mxu0 0.0
    %238 = vmatprep.subr.mxu0 0.0
    %239 = vmatpush2.xpose.msra.mxu0 0.0
    %240 = vmatprep.subr.mxu0 0.0
    %241 = vmatpush2.xpose.msra.mxu0 0.0
    %242 = vmatprep.subr.mxu0 0.0
    %243 = vmatpush2.xpose.msra.mxu0 0.0
    %244 = vmatprep.subr.mxu0 0.0
    %245 = vmatpush2.xpose.msra.mxu0 0.0
    %246 = vmatprep.mubr.f32.mxu0 0.0
    %247 = vmatmul.mubr.f32.gmra.mxu0 %v156
    %v248 = vpop.f32.mrf.mxu0
    %v249 = vadd.f32 %v154, %v248
    %v250 = vpop.f32.mrf.mxu0
    %251 = vdwg.mxu0
    %v252 = vld [vmem:[%s5] sm:$0x1]
    %v254 = vlaneseq
    %v255 = vshrl.u32 %v254, 7
    %v256 = vsub.s32 0, %v255
    %v257 = vrot.slane %v252, %v256
    %v259 = vadd.f32 %v249, %v257
    %vm260 = vcmask 523264
    %261 = vst.msk [vmem:[#allocation2] sm:$0xff] %vm260, %v259
    // Predicated region
    $region26: #{noisy_linear_forward.1} parent=1 // pred_check
      _
    $region27: #{noisy_linear_forward.1} parent=1 // pred_check_branch
      %263 = sbr.rel (0) target = $region29
    $region28: #{noisy_linear_forward.1} parent=1 // pred_region
      %s265 = ssub.s32 128, 128
      %266 = vsyncadd [#allocation3], %s265
      %s268 = sshll.u32 [#allocation2], 4
      %s269 = int_to_ptr.vmem [resolvable:$true] %s268
      %271 = dma.vmem_to_hbm [thread:$0]  %s269, 128, %s6, [#allocation3]
    $region29: #{noisy_linear_forward.1} parent=1 // pred_fallthru
      _
    // Predicated region
    $region30: #{noisy_linear_forward.1} parent=1 // pred_check
      _
    $region31: #{noisy_linear_forward.1} parent=1 // pred_check_branch
      %273 = sbr.rel (0) target = $region33
    $region32: #{noisy_linear_forward.1} parent=1 // pred_region
      %274 = dma.done [#allocation3], 128
    $region33: #{noisy_linear_forward.1} parent=1 // pred_fallthru
      _
    %275 = vsyncpa [#allocation3], 1

</llo_original>
